<compile_context>
chip_gen: v7x
topology: tpu7x:2x2x1
jax: 0.10.0
libtpu: 0.0.40
codegen_flags: <defaults>
</compile_context>

<pallas_src>
import jax
import jax.numpy as jnp
from jax.experimental import pallas as pl
from jax.experimental.pallas import tpu as pltpu

_LANE = 128
_SUBLANE = 8


# ----------------------------- Pallas kernels ------------------------------ #

def _avg_kernel(mask_ref, h_ref, o_ref, num_acc, den_acc):
    """Masked mean over the sequence axis, tiled over (batch, seq).

    mask tile [TB, TT], hidden tile [TB, TT, C] (native dtype), out [TB, C].
    num_acc [TB, C] f32 and den_acc [TB, 1] f32 persist across the seq axis.
    """
    j = pl.program_id(1)

    @pl.when(j == 0)
    def _init():
        num_acc[...] = jnp.zeros_like(num_acc)
        den_acc[...] = jnp.zeros_like(den_acc)

    m = mask_ref[...]
    # Masked sum of this seq tile as a batched matmul on the MXU; f32 accumulate.
    mh = m.astype(h_ref.dtype)[:, None, :]                      # [TB, 1, TT]
    num_acc[...] += jnp.einsum('bqt,btc->bqc', mh, h_ref[...],
                               preferred_element_type=jnp.float32)[:, 0, :]
    den_acc[...] += jnp.sum(m.astype(jnp.float32), axis=1, keepdims=True)

    @pl.when(j == pl.num_programs(1) - 1)
    def _finalize():
        # NOTE: den == 0 (fully padded row) divides by zero, same as the
        # PyTorch original.
        inv = pl.reciprocal(den_acc[...], approx=True)          # EUP slot
        o_ref[...] = (num_acc[...] * inv).astype(o_ref.dtype)


def _avg_pair_kernel(mask_ref, h1_ref, h2_ref, o_ref, num_acc, den_acc):
    """Masked mean of (h1 + h2) / 2 over the sequence axis, tiled like above.
    The two masked sums are accumulated separately — no (h1+h2)/2 f32 temp tile."""
    j = pl.program_id(1)

    @pl.when(j == 0)
    def _init():
        num_acc[...] = jnp.zeros_like(num_acc)
        den_acc[...] = jnp.zeros_like(den_acc)

    m = mask_ref[...]
    mh = m.astype(h1_ref.dtype)[:, None, :]                     # [TB, 1, TT]
    s1 = jnp.einsum('bqt,btc->bqc', mh, h1_ref[...],
                    preferred_element_type=jnp.float32)[:, 0, :]
    s2 = jnp.einsum('bqt,btc->bqc', mh, h2_ref[...],
                    preferred_element_type=jnp.float32)[:, 0, :]
    num_acc[...] += 0.5 * (s1 + s2)
    den_acc[...] += jnp.sum(m.astype(jnp.float32), axis=1, keepdims=True)

    @pl.when(j == pl.num_programs(1) - 1)
    def _finalize():
        inv = pl.reciprocal(den_acc[...], approx=True)
        o_ref[...] = (num_acc[...] * inv).astype(o_ref.dtype)


def _dense_tanh_kernel(x_ref, wt_ref, b_ref, o_ref):
    """tanh(x @ W^T + b).  The weight arrives pre-transposed ([in, out]) so the
    MXU consumes it directly — no in-kernel XLU transpose."""
    y = jnp.dot(x_ref[...], wt_ref[...], preferred_element_type=jnp.float32)
    y = y + b_ref[...].astype(jnp.float32)
    o_ref[...] = jnp.tanh(y).astype(o_ref.dtype)


# ------------------------------ tile sizing --------------------------------- #

def _pick_batch_tile(B):
    # Sublane-aligned batch tile when possible; otherwise the full batch.
    return _SUBLANE if (B >= _SUBLANE and B % _SUBLANE == 0) else B


def _pick_seq_tile(T, per_seq_row_bytes, n_hidden):
    """Largest 128-multiple divisor of T whose double-buffered hidden tiles fit a
    conservative VMEM budget (safe under the smallest default scoped limit, v5e)."""
    budget = (6 * 1024 * 1024) // (2 * max(1, n_hidden))   # bytes per in-flight tile
    cap = max(_LANE, budget // max(1, per_seq_row_bytes))
    c = (cap // _LANE) * _LANE
    while c >= _LANE:
        if T % c == 0:
            return c
        c -= _LANE
    return T   # short / awkward seq axis: take it whole (block dims == array dims)


_AVG_COMPILER_PARAMS = pltpu.CompilerParams(
    dimension_semantics=("parallel", "arbitrary"),   # batch parallel (v7x 2 TCs)
    vmem_limit_bytes=48 * 1024 * 1024,               # head-room on all generations
)


# ------------------------------ wrappers ------------------------------------ #

def _masked_avg(attention_mask, hidden):
    B, T, C = hidden.shape
    tb = _pick_batch_tile(B)
    tt = _pick_seq_tile(T, tb * C * hidden.dtype.itemsize, n_hidden=1)
    return pl.pallas_call(
        _avg_kernel,
        grid=(B // tb, T // tt),
        in_specs=[pl.BlockSpec((tb, tt), lambda i, j: (i, j)),
                  pl.BlockSpec((tb, tt, C), lambda i, j: (i, j, 0))],
        out_specs=pl.BlockSpec((tb, C), lambda i, j: (i, 0)),
        out_shape=jax.ShapeDtypeStruct((B, C), hidden.dtype),
        scratch_shapes=[pltpu.VMEM((tb, C), jnp.float32),
                        pltpu.VMEM((tb, 1), jnp.float32)],
        compiler_params=_AVG_COMPILER_PARAMS,
    )(attention_mask, hidden)


def _masked_avg_pair(attention_mask, h1, h2):
    B, T, C = h1.shape
    tb = _pick_batch_tile(B)
    tt = _pick_seq_tile(T, tb * C * h1.dtype.itemsize, n_hidden=2)
    return pl.pallas_call(
        _avg_pair_kernel,
        grid=(B // tb, T // tt),
        in_specs=[pl.BlockSpec((tb, tt), lambda i, j: (i, j)),
                  pl.BlockSpec((tb, tt, C), lambda i, j: (i, j, 0)),
                  pl.BlockSpec((tb, tt, C), lambda i, j: (i, j, 0))],
        out_specs=pl.BlockSpec((tb, C), lambda i, j: (i, 0)),
        out_shape=jax.ShapeDtypeStruct((B, C), h1.dtype),
        scratch_shapes=[pltpu.VMEM((tb, C), jnp.float32),
                        pltpu.VMEM((tb, 1), jnp.float32)],
        compiler_params=_AVG_COMPILER_PARAMS,
    )(attention_mask, h1, h2)


def _dense_tanh(x, w_t, b):
    """x:[T,C] @ w_t:[C,C] (pre-transposed weight) + b, then tanh."""
    T, C = x.shape
    tm = T
    for cand in (256, 128, 64, 32, 16, 8):
        if cand <= T and T % cand == 0:
            tm = cand
            break
    # TODO(synk): for very large C, also tile the contraction / output-C axes with
    # an f32 VMEM accumulator so the [C,C] weight need not be fully VMEM-resident.
    return pl.pallas_call(
        _dense_tanh_kernel,
        grid=(T // tm,),
        in_specs=[pl.BlockSpec((tm, C), lambda i: (i, 0)),
                  pl.BlockSpec((C, C), lambda i: (0, 0)),   # weight stays resident
                  pl.BlockSpec((1, C), lambda i: (0, 0))],
        out_specs=pl.BlockSpec((tm, C), lambda i: (i, 0)),
        out_shape=jax.ShapeDtypeStruct((T, C), x.dtype),
        compiler_params=pltpu.CompilerParams(dimension_semantics=("parallel",)),
    )(x, w_t, b)


# --------------------------------- module ----------------------------------- #

class Pooler:
    """JAX/Pallas port of the fairseq Pooler module."""

    POOLER_TYPES = ('cls', 'cls_before_pooler', 'cls_after_pooler',
                    'avg', 'avg_top2', 'avg_first_last')

    def __init__(self, pooler_type, encoder_embed_dim=None, key=None):
        assert pooler_type in self.POOLER_TYPES, \
            'unrecognized pooling type %s' % pooler_type
        self.pooler_type = pooler_type
        if pooler_type == 'cls_after_pooler':
            # Deterministic init mimicking torch.nn.Linear default (uniform +/- 1/sqrt(fan_in)).
            assert encoder_embed_dim is not None and key is not None
            k1, k2 = jax.random.split(key)
            bound = 1.0 / (encoder_embed_dim ** 0.5)
            self.dense_w = jax.random.uniform(
                k1, (encoder_embed_dim, encoder_embed_dim), jnp.float32, -bound, bound)
            # Store the transpose once ([in, out]) so the kernel never transposes.
            self.dense_wt = jnp.asarray(self.dense_w.T)
            self.dense_b = jax.random.uniform(
                k2, (1, encoder_embed_dim), jnp.float32, -bound, bound)

    def __call__(self, attention_mask, hidden_states):
        if self.pooler_type in ('cls_before_pooler', 'cls'):
            # Pure indexing — not a hot path; plain JAX slicing.
            return hidden_states[-1][0]
        elif self.pooler_type == 'cls_after_pooler':
            first_token_tensor = hidden_states[-1][0]          # [T, C]
            return _dense_tanh(first_token_tensor, self.dense_wt, self.dense_b)
        elif self.pooler_type == 'avg':
            return _masked_avg(attention_mask, hidden_states[-1])
        elif self.pooler_type == 'avg_first_last':
            return _masked_avg_pair(attention_mask, hidden_states[0], hidden_states[-1])
        elif self.pooler_type == 'avg_top2':
            return _masked_avg_pair(attention_mask, hidden_states[-1], hidden_states[-2])
        else:
            raise NotImplementedError


# ------------------------------- demo / check ------------------------------- #

if __name__ == "__main__":
    B, T, C, L = 2, 8, 32, 3   # batch, seq, hidden, num layers

    key = jax.random.PRNGKey(0)
    k_h, k_m, k_p = jax.random.split(key, 3)

    hidden_states = [
        jax.random.normal(jax.random.fold_in(k_h, i), (B, T, C), jnp.float32)
        for i in range(L)
    ]
    # attention mask: first row fully attended, second row has 2 padded positions.
    attention_mask = jnp.ones((B, T), jnp.float32).at[1, -2:].set(0.0)

    outputs = {}
    for ptype in Pooler.POOLER_TYPES:
        pooler = Pooler(ptype, encoder_embed_dim=C, key=k_p)
        out = pooler(attention_mask, hidden_states)
        out = jax.block_until_ready(out)
        outputs[ptype] = out

    # Reference checks in plain JAX (same math as the torch module).
    ref_avg = (jnp.sum(hidden_states[-1] * attention_mask[:, :, None], axis=1)
               / jnp.sum(attention_mask, axis=-1, keepdims=True))
    ref_fl = (jnp.sum((hidden_states[0] + hidden_states[-1]) / 2.0
                      * attention_mask[:, :, None], axis=1)
              / jnp.sum(attention_mask, axis=-1, keepdims=True))
    ref_t2 = (jnp.sum((hidden_states[-1] + hidden_states[-2]) / 2.0
                      * attention_mask[:, :, None], axis=1)
              / jnp.sum(attention_mask, axis=-1, keepdims=True))
    pooler_cap = Pooler('cls_after_pooler', encoder_embed_dim=C, key=k_p)
    ref_cap = jnp.tanh(hidden_states[-1][0] @ pooler_cap.dense_w.T + pooler_cap.dense_b)

    assert outputs['cls'].shape == (T, C)
    assert jnp.array_equal(outputs['cls_before_pooler'], hidden_states[-1][0])
    # Loose-ish tolerance on the avg paths because the final divide uses the
    # hardware approximate reciprocal (EUP).
    assert jnp.allclose(outputs['avg'], ref_avg, atol=1e-2, rtol=1e-2)
    assert jnp.allclose(outputs['avg_first_last'], ref_fl, atol=1e-2, rtol=1e-2)
    assert jnp.allclose(outputs['avg_top2'], ref_t2, atol=1e-2, rtol=1e-2)
    assert jnp.allclose(outputs['cls_after_pooler'], ref_cap, atol=1e-4, rtol=1e-4)

    print("KERNEL_OK")
</pallas_src>

<mosaic_0001>
module attributes {stable_mosaic.version = 11 : i64} {
  func.func @_dense_tanh_kernel(%arg0: i32, %arg1: memref<8x32xf32, #tpu.memory_space<vmem>>, %arg2: memref<32x32xf32, #tpu.memory_space<vmem>>, %arg3: memref<1x32xf32, #tpu.memory_space<vmem>>, %arg4: memref<8x32xf32, #tpu.memory_space<vmem>>) attributes {dimension_semantics = [#tpu.dimension_semantics<parallel>], iteration_bounds = array<i64: 1>, scalar_prefetch = 0 : i64, scratch_operands = 0 : i64, tpu.core_type = #tpu.core_type<tc>, window_params = [{transform_indices = @transform_0, window_bounds = array<i64: 8, 32>}, {pipeline_mode = #tpu.pipeline_mode<synchronous>, transform_indices = @transform_1, window_bounds = array<i64: 32, 32>}, {pipeline_mode = #tpu.pipeline_mode<synchronous>, transform_indices = @transform_2, window_bounds = array<i64: 1, 32>}, {transform_indices = @transform_3, window_bounds = array<i64: 8, 32>}]} {
    %c0 = arith.constant 0 : index
    %c0_0 = arith.constant 0 : index
    %0 = vector.load %arg1[%c0, %c0_0] : memref<8x32xf32, #tpu.memory_space<vmem>>, vector<8x32xf32>
    %c0_1 = arith.constant 0 : index
    %c0_2 = arith.constant 0 : index
    %1 = vector.load %arg2[%c0_1, %c0_2] : memref<32x32xf32, #tpu.memory_space<vmem>>, vector<32x32xf32>
    %cst = arith.constant dense<0.000000e+00> : vector<8x32xf32>
    %2 = tpu.matmul %0, %1, %cst {dimension_numbers = #tpu.dot_dimension_numbers<[1], [0], [0], [1], [0, 0, 1, 1], [], []>} : vector<8x32xf32>, vector<32x32xf32>, vector<8x32xf32> -> vector<8x32xf32>
    %c0_3 = arith.constant 0 : index
    %c0_4 = arith.constant 0 : index
    %3 = vector.load %arg3[%c0_3, %c0_4] : memref<1x32xf32, #tpu.memory_space<vmem>>, vector<1x32xf32>
    %4 = vector.broadcast %3 : vector<1x32xf32> to vector<8x32xf32>
    %5 = arith.addf %2, %4 : vector<8x32xf32>
    %6 = math.tanh %5 : vector<8x32xf32>
    %c0_5 = arith.constant 0 : index
    %c0_6 = arith.constant 0 : index
    %7 = vector.load %arg4[%c0_5, %c0_6] : memref<8x32xf32, #tpu.memory_space<vmem>>, vector<8x32xf32>
    tpu.vector_store %arg4[%c0_5, %c0_6], %6 {strides = array<i32>} : memref<8x32xf32, #tpu.memory_space<vmem>>, vector<8x32xf32>,
    return
  }
  func.func @transform_0(%arg0: i32) -> (i32, i32) {
    %c0_i32 = arith.constant 0 : i32
    %c0_i32_0 = arith.constant 0 : i32
    return %arg0, %c0_i32 : i32, i32
  }
  func.func @transform_1(%arg0: i32) -> (i32, i32) {
    %c0_i32 = arith.constant 0 : i32
    %c0_i32_0 = arith.constant 0 : i32
    %c0_i32_1 = arith.constant 0 : i32
    return %c0_i32, %c0_i32_0 : i32, i32
  }
  func.func @transform_2(%arg0: i32) -> (i32, i32) {
    %c0_i32 = arith.constant 0 : i32
    %c0_i32_0 = arith.constant 0 : i32
    %c0_i32_1 = arith.constant 0 : i32
    return %c0_i32, %c0_i32_0 : i32, i32
  }
  func.func @transform_3(%arg0: i32) -> (i32, i32) {
    %c0_i32 = arith.constant 0 : i32
    %c0_i32_0 = arith.constant 0 : i32
    return %arg0, %c0_i32 : i32, i32
  }
}

</mosaic_0001>

<llo_original>
// kernel: tpu_custom_call.1
$region0: #{tpu_custom_call.1}
  #allocation0 [shape = 'u32[]', space=smem, size = 0x4, offset = 0x4, fixed_abs, tag = 'smem constant byte address 0x4 - core index']
  #allocation1 [shape = 'u32[144,128]{1,0:T(1,128)}', space=vmem, size = 0x12000, scoped, tag = 'internal scratch']
  %s0 = inlined_call_operand.hbm [shape: f32[8,32], index: 0, kind: input, shape index: {}]
  %s1 = inlined_call_operand.hbm [shape: f32[32,32], index: 1, kind: input, shape index: {}]
  %s2 = inlined_call_operand.vmem [shape: f32[1,32], index: 2, kind: input, shape index: {}]
  %s3 = inlined_call_operand.hbm [shape: f32[8,32], index: 3, kind: output, shape index: {}]
  %s4 = sld [smem:[#allocation0]]
  $region30: #{tpu_custom_call.1} parent=0
    _
  %s6 = ssub.s32 1, %s4
  %s7 = scalar_select 0, %s6, %s4
  $region1: #{tpu_custom_call.1} parent=0
    #allocation2 [shape = 'u8[4096]{0}', space=vmem, size = 0x1000, scoped, tag = 'input window, operand 0, single buffered']
    #allocation3 [shape = 's32[1]{0}', space=sflag, size = 0x4, scoped, tag = 'scoped memory for tpu_custom_call.1']
    #allocation4 [shape = 's32[1]{0}', space=sflag, size = 0x4, scoped, tag = 'scoped memory for tpu_custom_call.1']
    #allocation5 [shape = 'u8[16384]{0}', space=vmem, size = 0x4000, scoped, tag = 'input window, operand 1, single buffered']
    #allocation6 [shape = 's32[1]{0}', space=sflag, size = 0x4, scoped, tag = 'scoped memory for tpu_custom_call.1']
    #allocation7 [shape = 'u8[4096]{0}', space=vmem, size = 0x1000, scoped, tag = 'output window, operand 0, single buffered']
    %8 = vsyncpa [#allocation3], 0
    %9 = vsyncpa [#allocation6], 0
    %10 = vsyncpa [#allocation4], 0
    // Predicated region
    $region2: #{tpu_custom_call.1} parent=1 // pred_check
      _
    $region3: #{tpu_custom_call.1} parent=1 // pred_check_branch
      %12 = sbr.rel (0) target = $region5
    $region4: #{tpu_custom_call.1} parent=1 // pred_region
      %s14 = ssub.s32 128, 128
      %15 = vsyncadd [#allocation3], %s14
      %s17 = sshll.u32 [#allocation2], 4
      %s18 = int_to_ptr.vmem [resolvable:$true] %s17
      %20 = dma.hbm_to_vmem [thread:$0]  %s0, 128, %s18, [#allocation3]
    $region5: #{tpu_custom_call.1} parent=1 // pred_fallthru
      _
    // Predicated region
    $region6: #{tpu_custom_call.1} parent=1 // pred_check
      _
    $region7: #{tpu_custom_call.1} parent=1 // pred_check_branch
      %22 = sbr.rel (0) target = $region9
    $region8: #{tpu_custom_call.1} parent=1 // pred_region
      %s24 = ssub.s32 512, 512
      %25 = vsyncadd [#allocation6], %s24
      %s26 = sshll.u32 [#allocation5], 4
      %s27 = int_to_ptr.vmem [resolvable:$true] %s26
      %32 = dma.hbm_to_vmem [thread:$0]  %s1, 512, %s27, [#allocation6], 128, 128, 8
    $region9: #{tpu_custom_call.1} parent=1 // pred_fallthru
      _
    // Predicated region
    $region10: #{tpu_custom_call.1} parent=1 // pred_check
      _
    $region11: #{tpu_custom_call.1} parent=1 // pred_check_branch
      %34 = sbr.rel (0) target = $region13
    $region12: #{tpu_custom_call.1} parent=1 // pred_region
      _
    $region13: #{tpu_custom_call.1} parent=1 // pred_fallthru
      _
    // Predicated region
    $region14: #{tpu_custom_call.1} parent=1 // pred_check
      _
    $region15: #{tpu_custom_call.1} parent=1 // pred_check_branch
      %36 = sbr.rel (0) target = $region17
    $region16: #{tpu_custom_call.1} parent=1 // pred_region
      %37 = dma.done [#allocation3], 128
    $region17: #{tpu_custom_call.1} parent=1 // pred_fallthru
      _
    // Predicated region
    $region18: #{tpu_custom_call.1} parent=1 // pred_check
      _
    $region19: #{tpu_custom_call.1} parent=1 // pred_check_branch
      %39 = sbr.rel (0) target = $region21
    $region20: #{tpu_custom_call.1} parent=1 // pred_region
      %40 = dma.done [#allocation6], 512
    $region21: #{tpu_custom_call.1} parent=1 // pred_fallthru
      _
    %v41 = vld [vmem:[#allocation2] sm:$0xff]
    %v42 = vld [vmem:[#allocation5] sm:$0xff]
    %v43 = vld [vmem:[#allocation5 + $0x8] sm:$0xff]
    %v44 = vld [vmem:[#allocation5 + $0x10] sm:$0xff]
    %v45 = vld [vmem:[#allocation5 + $0x18] sm:$0xff]
    %v46 = vld [vmem:[%s2] sm:$0x1]
    %v48 = vlaneseq
    %v49 = vshrl.u32 %v48, 7
    %v50 = vsub.s32 0, %v49
    %v51 = vrot.slane %v46, %v50
    %vm53 = vcmask 261120
    %v55 = vsel %vm53, %v41, 0
    %57 = vmatprep.subr.mxu0 0.0
    %58 = vmatpush1.msra.mxu0 %v42
    %59 = vmatprep.subr.mxu0 0.0
    %60 = vmatpush1.msra.mxu0 %v43
    %61 = vmatprep.subr.mxu0 0.0
    %62 = vmatpush1.msra.mxu0 %v44
    %63 = vmatprep.subr.mxu0 0.0
    %64 = vmatpush1.msra.mxu0 %v45
    %65 = vmatprep.subr.mxu0 0.0
    %66 = vmatpush1.msra.mxu0 0.0
    %67 = vmatprep.subr.mxu0 0.0
    %68 = vmatpush1.msra.mxu0 0.0
    %69 = vmatprep.subr.mxu0 0.0
    %70 = vmatpush1.msra.mxu0 0.0
    %71 = vmatprep.subr.mxu0 0.0
    %72 = vmatpush1.msra.mxu0 0.0
    %73 = vmatprep.subr.mxu0 0.0
    %74 = vmatpush1.msra.mxu0 0.0
    %75 = vmatprep.subr.mxu0 0.0
    %76 = vmatpush1.msra.mxu0 0.0
    %77 = vmatprep.subr.mxu0 0.0
    %78 = vmatpush1.msra.mxu0 0.0
    %79 = vmatprep.subr.mxu0 0.0
    %80 = vmatpush1.msra.mxu0 0.0
    %81 = vmatprep.subr.mxu0 0.0
    %82 = vmatpush1.msra.mxu0 0.0
    %83 = vmatprep.subr.mxu0 0.0
    %84 = vmatpush1.msra.mxu0 0.0
    %85 = vmatprep.subr.mxu0 0.0
    %86 = vmatpush1.msra.mxu0 0.0
    %87 = vmatprep.subr.mxu0 0.0
    %88 = vmatpush1.msra.mxu0 0.0
    %89 = vmatprep.subr.mxu0 0.0
    %90 = vmatpush1.msra.mxu0 0.0
    %91 = vmatprep.subr.mxu0 0.0
    %92 = vmatpush1.msra.mxu0 0.0
    %93 = vmatprep.subr.mxu0 0.0
    %94 = vmatpush1.msra.mxu0 0.0
    %95 = vmatprep.subr.mxu0 0.0
    %96 = vmatpush1.msra.mxu0 0.0
    %97 = vmatprep.subr.mxu0 0.0
    %98 = vmatpush1.msra.mxu0 0.0
    %99 = vmatprep.subr.mxu0 0.0
    %100 = vmatpush1.msra.mxu0 0.0
    %101 = vmatprep.subr.mxu0 0.0
    %102 = vmatpush1.msra.mxu0 0.0
    %103 = vmatprep.subr.mxu0 0.0
    %104 = vmatpush1.msra.mxu0 0.0
    %105 = vmatprep.subr.mxu0 0.0
    %106 = vmatpush1.msra.mxu0 0.0
    %107 = vmatprep.subr.mxu0 0.0
    %108 = vmatpush1.msra.mxu0 0.0
    %109 = vmatprep.subr.mxu0 0.0
    %110 = vmatpush1.msra.mxu0 0.0
    %111 = vmatprep.subr.mxu0 0.0
    %112 = vmatpush1.msra.mxu0 0.0
    %113 = vmatprep.subr.mxu0 0.0
    %114 = vmatpush1.msra.mxu0 0.0
    %115 = vmatprep.subr.mxu0 0.0
    %116 = vmatpush1.msra.mxu0 0.0
    %117 = vmatprep.subr.mxu0 0.0
    %118 = vmatpush1.msra.mxu0 0.0
    %119 = vmatprep.subr.mxu0 0.0
    %120 = vmatpush1.msra.mxu0 0.0
    %121 = vmatprep.mubr.f32.mxu0 0.0
    %122 = vmatmul.mubr.f32.gmra.mrb[0].mxu0 %v55
    %v123 = vpop.f32.mrb[0].mxu0
    %v124 = vadd.f32 %v51, %v123
    %v125 = vpop.f32.mrb[0].mxu0
    %126 = vdwg.mxu0
    %v127 = vtanh.pop %v124
    %128 = vst.msk [vmem:[#allocation7] sm:$0xff] %vm53, %v127
    // Predicated region
    $region22: #{tpu_custom_call.1} parent=1 // pred_check
      _
    $region23: #{tpu_custom_call.1} parent=1 // pred_check_branch
      %130 = sbr.rel (0) target = $region25
    $region24: #{tpu_custom_call.1} parent=1 // pred_region
      %s132 = ssub.s32 128, 128
      %133 = vsyncadd [#allocation4], %s132
      %s135 = sshll.u32 [#allocation7], 4
      %s136 = int_to_ptr.vmem [resolvable:$true] %s135
      %138 = dma.vmem_to_hbm [thread:$0]  %s136, 128, %s3, [#allocation4]
    $region25: #{tpu_custom_call.1} parent=1 // pred_fallthru
      _
    // Predicated region
    $region26: #{tpu_custom_call.1} parent=1 // pred_check
      _
    $region27: #{tpu_custom_call.1} parent=1 // pred_check_branch
      %140 = sbr.rel (0) target = $region29
    $region28: #{tpu_custom_call.1} parent=1 // pred_region
      %141 = dma.done [#allocation4], 128
    $region29: #{tpu_custom_call.1} parent=1 // pred_fallthru
      _
    %142 = vsyncpa [#allocation3], 1
    %143 = vsyncpa [#allocation6], 1
    %144 = vsyncpa [#allocation4], 1

</llo_original>
